<compile_context>
chip_gen: v5e
topology: v5e:2x2
jax: 0.10.0
libtpu: 0.0.40
codegen_flags: <defaults>
</compile_context>

<pallas_src>
import functools

import jax
import jax.numpy as jnp
from jax.experimental import pallas as pl
from jax.experimental.pallas import tpu as pltpu

_LANE = 128


# --------------------------------------------------------------------------
# Kernels
# --------------------------------------------------------------------------
def _conv_bn_relu_kernel(x_ref, w_ref, shift_ref, o_ref):
    # x_ref:     (tile_cin == C_in, T_hw)  spatial tile of one batch element
    # w_ref:     (tile_cout, C_in)         1x1 conv weight with BN scale folded
    # shift_ref: (tile_cout, 1)            folded BN shift = beta - mean*scale
    # o_ref:     (tile_cout, T_hw)
    acc = jnp.dot(w_ref[...], x_ref[...], preferred_element_type=jnp.float32)
    o_ref[...] = jnp.maximum(acc + shift_ref[...], 0.0).astype(o_ref.dtype)


def _conv_bn_relu_ksplit_kernel(x_ref, w_ref, shift_ref, o_ref, acc_ref):
    # Same as above, but C_in is split over the trailing ("arbitrary") grid
    # axis; partial products accumulate into a f32 VMEM scratch.
    k = pl.program_id(3)

    @pl.when(k == 0)
    def _():
        acc_ref[...] = jnp.zeros_like(acc_ref)

    acc_ref[...] += jnp.dot(w_ref[...], x_ref[...],
                            preferred_element_type=jnp.float32)

    @pl.when(k == pl.num_programs(3) - 1)
    def _():
        o_ref[...] = jnp.maximum(acc_ref[...] + shift_ref[...],
                                 0.0).astype(o_ref.dtype)


# --------------------------------------------------------------------------
# Tiling heuristics
# --------------------------------------------------------------------------
def _round_down_lane(x):
    return max(_LANE, (x // _LANE) * _LANE)


@functools.lru_cache(maxsize=1)
def _tpu_vmem_and_cores():
    """(per-core VMEM bytes, TensorCores per chip), defensively queried."""
    vmem = 64 * 1024 * 1024              # conservative default (v7x per-TC)
    try:
        vmem = int(pltpu.get_tpu_info().vmem_capacity_bytes)
    except Exception:                    # off-TPU emulation / older runtimes
        pass
    # 64 MiB/TC parts (v7x) carry 2 TensorCores per chip; the 128 MiB parts
    # (v5e/v6e) carry one.  Used only for the "keep >= 2 steps/core" rule.
    num_cores = 2 if vmem <= 64 * 1024 * 1024 else 1
    return vmem, num_cores


def _choose_tiles(N, C_in, C_out, HW, x_bytes):
    vmem_cap, num_cores = _tpu_vmem_and_cores()
    tile_budget = vmem_cap // 2          # leave headroom for Mosaic scratch

    # ---- channel tiling (only kicks in for large models) -------------------
    cout_cap = 512                       # multiple of 8 (sublane-legal)
    tile_cout = C_out if C_out <= cout_cap else cout_cap
    n_cout = pl.cdiv(C_out, tile_cout)   # ragged last block is store-masked

    cin_cap = 1024                       # reduction chunk, multiple of 128
    tile_cin = C_in
    if C_in > cin_cap:
        t = cin_cap
        while t >= _LANE and C_in % t:
            t -= _LANE
        if t >= _LANE:
            tile_cin = t                 # exact divisor keeps reduction unpadded
        # TODO(synk): pad C_in in the wrapper when it has no multiple-of-128
        # divisor <= cin_cap; such shapes currently keep the full C_in chunk.
    n_cin = C_in // tile_cin

    # ---- spatial tile sized against the real per-generation VMEM -----------
    per_lane = 2 * tile_cin * x_bytes + 2 * tile_cout * x_bytes  # dbl-buf x/out
    if n_cin > 1:
        per_lane += 4 * tile_cout                                # f32 accumulator
    fixed = (2 * tile_cout * tile_cin * x_bytes                  # weight (x2 buf)
             + 2 * tile_cout * 4                                 # shift  (x2 buf)
             + (1 << 20))                                        # slack
    max_hw = max((tile_budget - fixed) // per_lane, _LANE)
    max_hw = min(max_hw, 16384)          # diminishing returns past ~16K lanes

    if HW <= max_hw:
        tile_hw = HW                     # full spatial extent (always legal)
    else:
        tile_hw = _round_down_lane(max_hw)
    n_spatial = pl.cdiv(HW, tile_hw)

    # ---- keep >= 2 grid steps per TensorCore so megacore (v7x) stays busy --
    min_steps = 2 * num_cores
    par = N * n_cout
    if par * n_spatial < min_steps and HW > _LANE:
        want = pl.cdiv(min_steps, par)
        cand = _round_down_lane(pl.cdiv(HW, want))
        if cand < tile_hw:
            tile_hw = cand
            n_spatial = pl.cdiv(HW, tile_hw)

    # ---- explicit scoped-VMEM request (>= usage, <= ~3/4 physical) ---------
    needed = (2 * tile_cin * tile_hw * x_bytes
              + 2 * tile_cout * tile_hw * x_bytes
              + 2 * tile_cout * tile_cin * x_bytes
              + 2 * tile_cout * 4
              + (tile_cout * tile_hw * 4 if n_cin > 1 else 0))
    vmem_limit = int(min(max(2 * needed, 32 * 1024 * 1024),
                         (3 * vmem_cap) // 4))

    return tile_cout, n_cout, tile_cin, n_cin, tile_hw, n_spatial, vmem_limit


# --------------------------------------------------------------------------
# Wrapper
# --------------------------------------------------------------------------
@jax.jit
def conv_norm_activ(x_nchw, conv_w, bn_gamma, bn_beta, bn_mean, bn_var,
                    eps=1e-5):
    """Forward of ConvNormActiv(input_dim, output_dim, kernel_size=1,
    norm_type='bn', activ_type='relu') in eval mode.

    x_nchw : (N, C_in, H, W)  float32 or bfloat16
    conv_w : (C_out, C_in, 1, 1)      (bias=False because BN follows)
    bn_*   : (C_out,)
    returns: (N, C_out, H, W) in x's dtype
    """
    N, C_in, H, W = x_nchw.shape
    C_out = conv_w.shape[0]
    HW = H * W
    dtype = x_nchw.dtype
    x_bytes = jnp.dtype(dtype).itemsize

    # Fold eval-mode BatchNorm: scale into the weight, shift stays separate.
    scale = (bn_gamma.astype(jnp.float32)
             / jnp.sqrt(bn_var.astype(jnp.float32) + eps))            # (C_out,)
    shift = (bn_beta.astype(jnp.float32)
             - bn_mean.astype(jnp.float32) * scale).reshape(C_out, 1)  # (C_out,1)
    w_mat = (conv_w.reshape(C_out, C_in).astype(jnp.float32)
             * scale[:, None]).astype(dtype)                           # (C_out,C_in)

    # NCHW-native: contiguous reshape, no transpose / extra HBM pass.  The
    # spatial axis (H*W) sits on the lane dimension for input and output.
    x_flat = x_nchw.reshape(N, C_in, HW)

    (tile_cout, n_cout, tile_cin, n_cin,
     tile_hw, n_spatial, vmem_limit) = _choose_tiles(N, C_in, C_out, HW, x_bytes)

    cost = pl.CostEstimate(
        flops=2 * N * HW * C_in * C_out,
        transcendentals=0,
        bytes_accessed=(x_bytes * N * HW * (C_in + C_out)
                        + x_bytes * C_out * C_in + 4 * C_out),
    )

    if n_cin == 1:
        # Lean path: full C_in per step, no accumulator / pl.when overhead.
        kernel = _conv_bn_relu_kernel
        grid = (N, n_cout, n_spatial)
        in_specs = [
            pl.BlockSpec((None, C_in, tile_hw), lambda n, co, s: (n, 0, s)),
            pl.BlockSpec((tile_cout, C_in), lambda n, co, s: (co, 0)),
            pl.BlockSpec((tile_cout, 1), lambda n, co, s: (co, 0)),
        ]
        out_spec = pl.BlockSpec((None, tile_cout, tile_hw),
                                lambda n, co, s: (n, co, s))
        scratch = []
        semantics = ("parallel", "parallel", "parallel")
    else:
        # Large-C_in path: reduction axis last ("arbitrary"), f32 accumulator.
        kernel = _conv_bn_relu_ksplit_kernel
        grid = (N, n_cout, n_spatial, n_cin)
        in_specs = [
            pl.BlockSpec((None, tile_cin, tile_hw),
                         lambda n, co, s, k: (n, k, s)),
            pl.BlockSpec((tile_cout, tile_cin), lambda n, co, s, k: (co, k)),
            pl.BlockSpec((tile_cout, 1), lambda n, co, s, k: (co, 0)),
        ]
        out_spec = pl.BlockSpec((None, tile_cout, tile_hw),
                                lambda n, co, s, k: (n, co, s))
        scratch = [pltpu.VMEM((tile_cout, tile_hw), jnp.float32)]
        semantics = ("parallel", "parallel", "parallel", "arbitrary")

    out_flat = pl.pallas_call(
        kernel,
        out_shape=jax.ShapeDtypeStruct((N, C_out, HW), dtype),
        grid_spec=pltpu.PrefetchScalarGridSpec(
            num_scalar_prefetch=0,
            grid=grid,
            in_specs=in_specs,
            out_specs=out_spec,
            scratch_shapes=scratch,
        ),
        compiler_params=pltpu.CompilerParams(
            dimension_semantics=semantics,
            vmem_limit_bytes=vmem_limit,
        ),
        cost_estimate=cost,
    )(x_flat, w_mat, shift)

    return out_flat.reshape(N, C_out, H, W)


# --------------------------------------------------------------------------
# Self-test
# --------------------------------------------------------------------------
if __name__ == "__main__":
    key = jax.random.PRNGKey(0)
    k_x, k_w, k_g, k_b, k_m, k_v = jax.random.split(key, 6)

    N, C_in, H, W = 2, 4, 16, 16
    C_out = 8

    x = jax.random.normal(k_x, (N, C_in, H, W), dtype=jnp.float32)
    # Conv2d weight shape: (C_out, C_in, 1, 1); bias=False because BN follows.
    conv_w = 0.1 * jax.random.normal(k_w, (C_out, C_in, 1, 1), dtype=jnp.float32)
    bn_gamma = 1.0 + 0.1 * jax.random.normal(k_g, (C_out,), dtype=jnp.float32)
    bn_beta = 0.1 * jax.random.normal(k_b, (C_out,), dtype=jnp.float32)
    bn_mean = 0.1 * jax.random.normal(k_m, (C_out,), dtype=jnp.float32)
    bn_var = jnp.abs(1.0 + 0.1 * jax.random.normal(k_v, (C_out,), dtype=jnp.float32))

    out = conv_norm_activ(x, conv_w, bn_gamma, bn_beta, bn_mean, bn_var)
    jax.block_until_ready(out)

    # Pure-JAX reference (eval-mode BN semantics).
    w_ref = conv_w.reshape(C_out, C_in)
    conv_ref = jnp.einsum("nchw,oc->nohw", x, w_ref)
    scale_ref = bn_gamma / jnp.sqrt(bn_var + 1e-5)
    shift_ref = bn_beta - bn_mean * scale_ref
    ref = jnp.maximum(conv_ref * scale_ref[None, :, None, None]
                      + shift_ref[None, :, None, None], 0.0)

    assert out.shape == (N, C_out, H, W)
    assert jnp.allclose(out, ref, atol=1e-5, rtol=1e-5)

    print("KERNEL_OK")
</pallas_src>

<mosaic_0001>
module attributes {stable_mosaic.version = 11 : i64} {
  func.func @_conv_bn_relu_kernel(%arg0: i32, %arg1: i32, %arg2: i32, %arg3: memref<1x4x128xf32, #tpu.memory_space<vmem>>, %arg4: memref<8x4xf32, #tpu.memory_space<vmem>>, %arg5: memref<8x1xf32, #tpu.memory_space<vmem>>, %arg6: memref<1x8x128xf32, #tpu.memory_space<vmem>>) attributes {dimension_semantics = [#tpu.dimension_semantics<parallel>, #tpu.dimension_semantics<parallel>, #tpu.dimension_semantics<parallel>], iteration_bounds = array<i64: 2, 1, 2>, scalar_prefetch = 0 : i64, scratch_operands = 0 : i64, tpu.core_type = #tpu.core_type<tc>, window_params = [{transform_indices = @transform_0, window_bounds = array<i64: 1, 4, 128>}, {transform_indices = @transform_1, window_bounds = array<i64: 8, 4>}, {transform_indices = @transform_2, window_bounds = array<i64: 8, 1>}, {transform_indices = @transform_3, window_bounds = array<i64: 1, 8, 128>}]} {
    %c0 = arith.constant 0 : index
    %c0_0 = arith.constant 0 : index
    %0 = vector.load %arg4[%c0, %c0_0] : memref<8x4xf32, #tpu.memory_space<vmem>>, vector<8x4xf32>
    %c0_1 = arith.constant 0 : index
    %c0_2 = arith.constant 0 : index
    %c0_3 = arith.constant 0 : index
    %1 = vector.load %arg3[%c0_1, %c0_2, %c0_3] : memref<1x4x128xf32, #tpu.memory_space<vmem>>, vector<1x4x128xf32>
    %2 = vector.shape_cast %1 : vector<1x4x128xf32> to vector<4x128xf32>
    %cst = arith.constant dense<0.000000e+00> : vector<8x128xf32>
    %3 = tpu.matmul %0, %2, %cst {dimension_numbers = #tpu.dot_dimension_numbers<[1], [0], [0], [1], [0, 0, 1, 1], [], []>} : vector<8x4xf32>, vector<4x128xf32>, vector<8x128xf32> -> vector<8x128xf32>
    %c0_4 = arith.constant 0 : index
    %c0_5 = arith.constant 0 : index
    %4 = vector.load %arg5[%c0_4, %c0_5] : memref<8x1xf32, #tpu.memory_space<vmem>>, vector<8x1xf32>
    %5 = vector.broadcast %4 : vector<8x1xf32> to vector<8x128xf32>
    %6 = arith.addf %3, %5 : vector<8x128xf32>
    %cst_6 = arith.constant 0.000000e+00 : f32
    %7 = vector.broadcast %cst_6 : f32 to vector<8x128xf32>
    %8 = arith.maximumf %6, %7 : vector<8x128xf32>
    %c0_7 = arith.constant 0 : index
    %c0_8 = arith.constant 0 : index
    %c0_9 = arith.constant 0 : index
    %9 = vector.load %arg6[%c0_7, %c0_8, %c0_9] : memref<1x8x128xf32, #tpu.memory_space<vmem>>, vector<1x8x128xf32>
    %10 = vector.shape_cast %9 : vector<1x8x128xf32> to vector<8x128xf32>
    %11 = vector.shape_cast %8 : vector<8x128xf32> to vector<1x8x128xf32>
    tpu.vector_store %arg6[%c0_7, %c0_8, %c0_9], %11 {strides = array<i32>} : memref<1x8x128xf32, #tpu.memory_space<vmem>>, vector<1x8x128xf32>,
    return
  }
  func.func @transform_0(%arg0: i32, %arg1: i32, %arg2: i32) -> (i32, i32, i32) {
    %c0_i32 = arith.constant 0 : i32
    %c0_i32_0 = arith.constant 0 : i32
    return %arg0, %c0_i32, %arg2 : i32, i32, i32
  }
  func.func @transform_1(%arg0: i32, %arg1: i32, %arg2: i32) -> (i32, i32) {
    %c0_i32 = arith.constant 0 : i32
    %c0_i32_0 = arith.constant 0 : i32
    return %arg1, %c0_i32 : i32, i32
  }
  func.func @transform_2(%arg0: i32, %arg1: i32, %arg2: i32) -> (i32, i32) {
    %c0_i32 = arith.constant 0 : i32
    %c0_i32_0 = arith.constant 0 : i32
    return %arg1, %c0_i32 : i32, i32
  }
  func.func @transform_3(%arg0: i32, %arg1: i32, %arg2: i32) -> (i32, i32, i32) {
    %c0_i32 = arith.constant 0 : i32
    return %arg0, %arg1, %arg2 : i32, i32, i32
  }
}

</mosaic_0001>

<llo_original>
// kernel: conv_norm_activ.1
$region0: #{conv_norm_activ.1}
  #allocation0 [shape = 'u32[]', space=smem, size = 0x4, offset = 0x4, fixed_abs, tag = 'smem constant byte address 0x4 - core index']
  #allocation1 [shape = 'u32[72,128]{1,0:T(1,128)}', space=vmem, size = 0x9000, scoped, tag = 'internal scratch']
  %s0 = inlined_call_operand.vmem [shape: f32[2,4,256], index: 0, kind: input, shape index: {}]
  %s1 = inlined_call_operand.vmem [shape: f32[8,4], index: 1, kind: input, shape index: {}]
  %s2 = inlined_call_operand.vmem [shape: f32[8,1], index: 2, kind: input, shape index: {}]
  %s3 = inlined_call_operand.vmem [shape: f32[2,8,256], index: 3, kind: output, shape index: {}]
  %s4 = sld [smem:[#allocation0]]
  $region45: #{conv_norm_activ.1} parent=0
    _
  %s6 = ssub.s32 1, %s4
  %s7 = scalar_select 0, %s6, %s4
  loop: start=0, step=1, limit=6
  $region2: #{conv_norm_activ.1} parent=0 // loop_pre_header
    _
  $region3: #{conv_norm_activ.1} parent=0 // loop_header
    %s9 = sphi 0, %s13
    %p10 = scmp.ge.s32.totalorder %s9, 6
    %s16 = sphi 0, %s35
    %s17 = sphi 0, %s31
    %s18 = sphi 0, %s27
    %s19 = sphi 0, %s16
    %s20 = sphi 0, %s17
    %s21 = sphi 0, %s18
    %s22 = sphi 0, %s19
    %s23 = sphi 0, %s20
    %s24 = sphi 0, %s21
    %s40 = sphi 0, %s42
    %s43 = sphi 0, %s40
    %s44 = sphi 0, %s43
    %s60 = sphi 0, %s44
    %s66 = sphi 0, %s68
    %s69 = sphi 0, %s66
    %s70 = sphi 0, %s69
    %s86 = sphi 0, %s70
    %s92 = sphi 0, %s94
    %s95 = sphi 0, %s92
    %s96 = sphi 0, %s95
    %s112 = sphi 0, %s96
    %s122 = sphi 0, %s124
    %s125 = sphi 0, %s122
    %s126 = sphi 0, %s125
    %s142 = sphi 0, %s126
  $region4: #{conv_norm_activ.1} parent=0 // loop_header_branch
    %12 = sbr.rel (%p10) target = $region8
  $region5: #{conv_norm_activ.1} parent=0 // loop_body
    %s14 = ssub.s32 %s9, 1
    %s15 = ssub.s32 %s9, 2
    %s25 = sadd.s32 1, %s18
    %p26 = scmp.ge.s32.totalorder %s25, 2
    %s27 = scalar_select %p26, 0, %s25
    %s28 = sadd.s32 1, %s17
    %s29 = scalar_select %p26, %s28, %s17
    %p30 = scmp.ge.s32.totalorder %s29, 1
    %s31 = scalar_select %p30, 0, %s29
    %s32 = sadd.s32 1, %s16
    %s33 = scalar_select %p30, %s32, %s16
    %p34 = scmp.ge.s32.totalorder %s33, 2
    %s35 = scalar_select %p34, 0, %s33
    %s36 = ssub.s32 %s16, %s35
    %s37 = ssub.s32 %s18, %s27
    %s38 = sor.u32 %s36, %s37
    %p39 = scmp.eq.s32.totalorder %s38, 0
    %s41 = sadd.s32 %s40, 1
    %s42 = scalar_select %p39, %s40, %s41
    %p45 = pneg %p39
    %p46 = scmp.eq.s32.totalorder %s9, 3
    %p47 = por %p45, %p46
    %p48 = scmp.ne.s32.totalorder %s40, %s43
    %p49 = scmp.eq.s32.totalorder %s9, 0
    %p50 = por %p48, %p49
    %p51 = scmp.ne.s32.totalorder %s40, %s43
    %p52 = scmp.eq.s32.totalorder %s14, 3
    %p53 = por %p51, %p52
    %p54 = scmp.ne.s32.totalorder %s43, %s44
    %p55 = scmp.eq.s32.totalorder %s14, 0
    %p56 = por %p54, %p55
    %p57 = scmp.ne.s32.totalorder %s43, %s44
    %p58 = scmp.eq.s32.totalorder %s15, 3
    %p59 = por %p57, %p58
    %p61 = scmp.ne.s32.totalorder %s44, %s60
    %p62 = scmp.eq.s32.totalorder %s15, 0
    %p63 = por %p61, %p62
    %s64 = ssub.s32 %s17, %s31
    %p65 = scmp.eq.s32.totalorder %s64, 0
    %s67 = sadd.s32 %s66, 1
    %s68 = scalar_select %p65, %s66, %s67
    %p71 = pneg %p65
    %p72 = scmp.eq.s32.totalorder %s9, 3
    %p73 = por %p71, %p72
    %p74 = scmp.ne.s32.totalorder %s66, %s69
    %p75 = scmp.eq.s32.totalorder %s9, 0
    %p76 = por %p74, %p75
    %p77 = scmp.ne.s32.totalorder %s66, %s69
    %p78 = scmp.eq.s32.totalorder %s14, 3
    %p79 = por %p77, %p78
    %p80 = scmp.ne.s32.totalorder %s69, %s70
    %p81 = scmp.eq.s32.totalorder %s14, 0
    %p82 = por %p80, %p81
    %p83 = scmp.ne.s32.totalorder %s69, %s70
    %p84 = scmp.eq.s32.totalorder %s15, 3
    %p85 = por %p83, %p84
    %p87 = scmp.ne.s32.totalorder %s70, %s86
    %p88 = scmp.eq.s32.totalorder %s15, 0
    %p89 = por %p87, %p88
    %s90 = ssub.s32 %s17, %s31
    %p91 = scmp.eq.s32.totalorder %s90, 0
    %s93 = sadd.s32 %s92, 1
    %s94 = scalar_select %p91, %s92, %s93
    %p97 = pneg %p91
    %p98 = scmp.eq.s32.totalorder %s9, 3
    %p99 = por %p97, %p98
    %p100 = scmp.ne.s32.totalorder %s92, %s95
    %p101 = scmp.eq.s32.totalorder %s9, 0
    %p102 = por %p100, %p101
    %p103 = scmp.ne.s32.totalorder %s92, %s95
    %p104 = scmp.eq.s32.totalorder %s14, 3
    %p105 = por %p103, %p104
    %p106 = scmp.ne.s32.totalorder %s95, %s96
    %p107 = scmp.eq.s32.totalorder %s14, 0
    %p108 = por %p106, %p107
    %p109 = scmp.ne.s32.totalorder %s95, %s96
    %p110 = scmp.eq.s32.totalorder %s15, 3
    %p111 = por %p109, %p110
    %p113 = scmp.ne.s32.totalorder %s96, %s112
    %p114 = scmp.eq.s32.totalorder %s15, 0
    %p115 = por %p113, %p114
    %s116 = ssub.s32 %s16, %s35
    %s117 = ssub.s32 %s17, %s31
    %s118 = sor.u32 %s116, %s117
    %s119 = ssub.s32 %s18, %s27
    %s120 = sor.u32 %s118, %s119
    %p121 = scmp.eq.s32.totalorder %s120, 0
    %s123 = sadd.s32 %s122, 1
    %s124 = scalar_select %p121, %s122, %s123
    %p127 = pneg %p121
    %p128 = scmp.eq.s32.totalorder %s9, 3
    %p129 = por %p127, %p128
    %p130 = scmp.ne.s32.totalorder %s122, %s125
    %p131 = scmp.eq.s32.totalorder %s9, 0
    %p132 = por %p130, %p131
    %p133 = scmp.ne.s32.totalorder %s122, %s125
    %p134 = scmp.eq.s32.totalorder %s14, 3
    %p135 = por %p133, %p134
    %p136 = scmp.ne.s32.totalorder %s125, %s126
    %p137 = scmp.eq.s32.totalorder %s14, 0
    %p138 = por %p136, %p137
    %p139 = scmp.ne.s32.totalorder %s125, %s126
    %p140 = scmp.eq.s32.totalorder %s15, 3
    %p141 = por %p139, %p140
    %p143 = scmp.ne.s32.totalorder %s126, %s142
    %p144 = scmp.eq.s32.totalorder %s15, 0
    %p145 = por %p143, %p144
    %p146 = scmp.le.s32.totalorder 1, %s9
    %p147 = scmp.lt.s32.totalorder %s9, 5
    %p148 = pnand %p146, %p147
    %p149 = pneg %p148
    // Predicated region
    $region9: #{conv_norm_activ.1} parent=5 // pred_check
      _
    $region10: #{conv_norm_activ.1} parent=5 // pred_check_branch
      %151 = sbr.rel (%p148) target = $region12
    $region11: #{conv_norm_activ.1} parent=5 // pred_region
      %s152 = ssub.s32 %s9, 1
      // Predicated region
      $region13: #{conv_norm_activ.1} parent=11 // pred_check
        %p153 = pneg %p82
      $region14: #{conv_norm_activ.1} parent=11 // pred_check_branch
        %155 = sbr.rel (%p153) target = $region16
      $region15: #{conv_norm_activ.1} parent=11 // pred_region
        %p156 = scmp.lt.s32.totalorder %s20, 0
        %s157 = scalar_select %p156, %s20, 0
        %s158 = smul.addr %s157, 8
        %s159 = scalar_lea.vmem %s1, %s158
      $region16: #{conv_norm_activ.1} parent=11 // pred_fallthru
        _
      // Predicated region
      $region17: #{conv_norm_activ.1} parent=11 // pred_check
        %p160 = pneg %p108
      $region18: #{conv_norm_activ.1} parent=11 // pred_check_branch
        %162 = sbr.rel (%p160) target = $region20
      $region19: #{conv_norm_activ.1} parent=11 // pred_region
        %p163 = scmp.lt.s32.totalorder %s20, 0
        %s164 = scalar_select %p163, %s20, 0
        %s165 = smul.addr %s164, 8
        %s166 = scalar_lea.vmem %s2, %s165
      $region20: #{conv_norm_activ.1} parent=11 // pred_fallthru
        _
    $region12: #{conv_norm_activ.1} parent=5 // pred_fallthru
      _
    %p167 = scmp.lt.s32.totalorder %s9, 4
    // Predicated region
    $region21: #{conv_norm_activ.1} parent=5 // pred_check
      %p168 = pneg %p167
    $region22: #{conv_norm_activ.1} parent=5 // pred_check_branch
      %170 = sbr.rel (%p168) target = $region24
    $region23: #{conv_norm_activ.1} parent=5 // pred_region
      // Predicated region
      $region25: #{conv_norm_activ.1} parent=23 // pred_check
        %p171 = pneg %p50
      $region26: #{conv_norm_activ.1} parent=23 // pred_check_branch
        %173 = sbr.rel (%p171) target = $region28
      $region27: #{conv_norm_activ.1} parent=23 // pred_region
        %p174 = scmp.lt.s32.totalorder %s16, 1
        %s175 = scalar_select %p174, %s16, 1
        %p176 = scmp.lt.s32.totalorder %s18, 1
        %s177 = scalar_select %p176, %s18, 1
        %s178 = smul.addr %s175, 2
        %s179 = sadd.s32 %s177, %s178
        %s180 = smul.addr %s179, 4
        %s181 = scalar_lea.vmem %s0, %s180
      $region28: #{conv_norm_activ.1} parent=23 // pred_fallthru
        _
    $region24: #{conv_norm_activ.1} parent=5 // pred_fallthru
      _
    %p182 = scmp.le.s32.totalorder 1, %s9
    %p183 = scmp.lt.s32.totalorder %s9, 5
    %p184 = pnand %p182, %p183
    %p185 = pneg %p184
    // Predicated region
    $region29: #{conv_norm_activ.1} parent=5 // pred_check
      _
    $region30: #{conv_norm_activ.1} parent=5 // pred_check_branch
      %187 = sbr.rel (%p184) target = $region32
    $region31: #{conv_norm_activ.1} parent=5 // pred_region
      %s188 = ssub.s32 %s9, 1
      %p189 = scmp.lt.s32.totalorder %s19, 1
      %s190 = scalar_select %p189, %s19, 1
      %p191 = scmp.lt.s32.totalorder %s21, 1
      %s192 = scalar_select %p191, %s21, 1
      %s193 = smul.addr %s190, 2
      %s194 = sadd.s32 %s192, %s193
      %s195 = smul.addr %s194, 4
      %s196 = scalar_lea.vmem %s0, %s195
      %p197 = pneg %p56
      %p198 = pneg %p53
      %p199 = scmp.lt.s32.totalorder %s20, 0
      %s200 = scalar_select %p199, %s20, 0
      %s201 = smul.addr %s200, 8
      %s202 = scalar_lea.vmem %s1, %s201
      %p203 = pneg %p82
      %p204 = pneg %p79
      %p205 = scmp.lt.s32.totalorder %s20, 0
      %s206 = scalar_select %p205, %s20, 0
      %s207 = smul.addr %s206, 8
      %s208 = scalar_lea.vmem %s2, %s207
      %p209 = pneg %p108
      %p210 = pneg %p105
      %p211 = pneg %p138
      %p212 = pneg %p135
      %p213 = scmp.lt.s32.totalorder %s19, 1
      %s214 = scalar_select %p213, %s19, 1
      %p215 = scmp.lt.s32.totalorder %s20, 0
      %s216 = scalar_select %p215, %s20, 0
      %p217 = scmp.lt.s32.totalorder %s21, 1
      %s218 = scalar_select %p217, %s21, 1
      %s219 = smul.addr %s216, 2
      %s220 = sadd.s32 %s218, %s219
      %s221 = smul.addr %s214, 2
      %s222 = sadd.s32 %s220, %s221
      %s223 = smul.addr %s222, 8
      %s224 = scalar_lea.vmem %s3, %s223
      %p225 = scmp.lt.s32.totalorder %s19, 1
      %s226 = scalar_select %p225, %s19, 1
      %p227 = scmp.lt.s32.totalorder %s21, 1
      %s228 = scalar_select %p227, %s21, 1
      %s229 = smul.addr %s226, 2
      %s230 = sadd.s32 %s228, %s229
      %s231 = smul.addr %s230, 4
      %s232 = scalar_lea.vmem %s0, %s231
      %p233 = scmp.lt.s32.totalorder %s20, 0
      %s234 = scalar_select %p233, %s20, 0
      %s235 = smul.addr %s234, 8
      %s236 = scalar_lea.vmem %s1, %s235
      %p237 = scmp.lt.s32.totalorder %s20, 0
      %s238 = scalar_select %p237, %s20, 0
      %s239 = smul.addr %s238, 8
      %s240 = scalar_lea.vmem %s2, %s239
      %p241 = scmp.lt.s32.totalorder %s19, 1
      %s242 = scalar_select %p241, %s19, 1
      %p243 = scmp.lt.s32.totalorder %s20, 0
      %s244 = scalar_select %p243, %s20, 0
      %p245 = scmp.lt.s32.totalorder %s21, 1
      %s246 = scalar_select %p245, %s21, 1
      %s247 = smul.addr %s244, 2
      %s248 = sadd.s32 %s246, %s247
      %s249 = smul.addr %s242, 2
      %s250 = sadd.s32 %s248, %s249
      %s251 = smul.addr %s250, 8
      %s252 = scalar_lea.vmem %s3, %s251
      %v253 = vld [vmem:[%s236] sm:$0xff]
      %v254 = vld [vmem:[%s232] sm:$0xf]
      %v255 = vld [vmem:[%s240] sm:$0xff]
      %257 = vset.pattern.permute.xlu0 0
      %258 = vperm.xlu0 %257, %v255
      %v259 = vpop.permute.xlu0 %258
      %vm261 = vcmask 31744
      %v263 = vsel %vm261, %v253, 0
      %vm265 = vcmask 1043456
      %v267 = vsel %vm265, %v254, 0
      %269 = vmatpush.msra.mxu0 0.0
      %270 = vmatpush.msra.mxu0 0.0
      %271 = vmatpush.msra.mxu0 0.0
      %272 = vmatpush.msra.mxu0 0.0
      %273 = vmatpush.msra.mxu0 0.0
      %274 = vmatpush.msra.mxu0 0.0
      %275 = vmatpush.msra.mxu0 0.0
      %276 = vmatpush.msra.mxu0 0.0
      %277 = vmatpush.msra.mxu0 0.0
      %278 = vmatpush.msra.mxu0 0.0
      %279 = vmatpush.msra.mxu0 0.0
      %280 = vmatpush.msra.mxu0 0.0
      %281 = vmatpush.msra.mxu0 0.0
      %282 = vmatpush.msra.mxu0 0.0
      %283 = vmatpush.msra.mxu0 0.0
      %284 = vmatpush.msra.mxu0 %v267
      %285 = vmatmul.f32.gmra.mxu0 %v263
      %v286 = vpop.f32.mrf.mxu0
      %v287 = vadd.f32 %v259, %v286
      %288 = vdwg.mxu0
      %v289 = vmax.f32 %v287, 0.0
      %290 = vst [vmem:[%s252] sm:$0xff] %v289
      %p291 = scmp.lt.s32.totalorder %s19, 1
      %s292 = scalar_select %p291, %s19, 1
      %p293 = scmp.lt.s32.totalorder %s20, 0
      %s294 = scalar_select %p293, %s20, 0
      %p295 = scmp.lt.s32.totalorder %s21, 1
      %s296 = scalar_select %p295, %s21, 1
      %s297 = smul.addr %s294, 2
      %s298 = sadd.s32 %s296, %s297
      %s299 = smul.addr %s292, 2
      %s300 = sadd.s32 %s298, %s299
      %s301 = smul.addr %s300, 8
      %s302 = scalar_lea.vmem %s3, %s301
      // Predicated region
      $region33: #{conv_norm_activ.1} parent=31 // pred_check
        %p303 = pneg %p135
      $region34: #{conv_norm_activ.1} parent=31 // pred_check_branch
        %305 = sbr.rel (%p303) target = $region36
      $region35: #{conv_norm_activ.1} parent=31 // pred_region
        _
      $region36: #{conv_norm_activ.1} parent=31 // pred_fallthru
        _
    $region32: #{conv_norm_activ.1} parent=5 // pred_fallthru
      _
    %p306 = scmp.le.s32.totalorder 2, %s9
    // Predicated region
    $region37: #{conv_norm_activ.1} parent=5 // pred_check
      %p307 = pneg %p306
    $region38: #{conv_norm_activ.1} parent=5 // pred_check_branch
      %309 = sbr.rel (%p307) target = $region40
    $region39: #{conv_norm_activ.1} parent=5 // pred_region
      %s310 = ssub.s32 %s9, 2
      // Predicated region
      $region41: #{conv_norm_activ.1} parent=39 // pred_check
        %p311 = pneg %p141
      $region42: #{conv_norm_activ.1} parent=39 // pred_check_branch
        %313 = sbr.rel (%p311) target = $region44
      $region43: #{conv_norm_activ.1} parent=39 // pred_region
        %p314 = scmp.lt.s32.totalorder %s22, 1
        %s315 = scalar_select %p314, %s22, 1
        %p316 = scmp.lt.s32.totalorder %s23, 0
        %s317 = scalar_select %p316, %s23, 0
        %p318 = scmp.lt.s32.totalorder %s24, 1
        %s319 = scalar_select %p318, %s24, 1
        %s320 = smul.addr %s317, 2
        %s321 = sadd.s32 %s319, %s320
        %s322 = smul.addr %s315, 2
        %s323 = sadd.s32 %s321, %s322
        %s324 = smul.addr %s323, 8
        %s325 = scalar_lea.vmem %s3, %s324
      $region44: #{conv_norm_activ.1} parent=39 // pred_fallthru
        _
    $region40: #{conv_norm_activ.1} parent=5 // pred_fallthru
      _
  $region6: #{conv_norm_activ.1} parent=0 // loop_footer
    %s13 = sadd.s32 1, %s9
  $region7: #{conv_norm_activ.1} parent=0 // loop_footer_branch
    %8 = sbr.rel target = $region3
  $region8: #{conv_norm_activ.1} parent=0 // loop_exit
    _

</llo_original>
